<compile_context>
chip_gen: v6e
topology: v6e:2x2x1
jax: 0.10.0
libtpu: 0.0.40
codegen_flags: <defaults>
</compile_context>

<pallas_src>
import jax
import jax.numpy as jnp
from jax.experimental import pallas as pl
from jax.experimental.pallas import tpu as pltpu

_LANE = 128                              # TPU lane width
_WIDE_LANES = 512                        # wider lane-dense rows -> fatter unmasked vst / DMA bursts
_TARGET_BLOCK_BYTES = 4 * 1024 * 1024    # ~4 MiB per block: amortizes 0.35 us step overhead on all gens
_VMEM_LIMIT_BYTES = 40 * 1024 * 1024     # explicit scoped-VMEM headroom (v5e default is only 16 MiB)


# ---------------------------------------------------------------------------
# Path 1: direct HBM->HBM DMA copy (no grid, no VMEM staging).
# ---------------------------------------------------------------------------
def _dma_copy_kernel(x_hbm, o_hbm, sem):
    cp = pltpu.make_async_copy(x_hbm, o_hbm, sem)
    cp.start()
    cp.wait()


def _pallas_identity_dma(x: jax.Array) -> jax.Array:
    """Identity copy bounded only by HBM bandwidth on v5e/v6e/v7x."""
    return pl.pallas_call(
        _dma_copy_kernel,
        out_shape=jax.ShapeDtypeStruct(x.shape, x.dtype),
        in_specs=[pl.BlockSpec(memory_space=pl.ANY)],
        out_specs=pl.BlockSpec(memory_space=pl.ANY),
        scratch_shapes=[pltpu.SemaphoreType.DMA],
        compiler_params=pltpu.CompilerParams(has_side_effects=True),
    )(x)


# ---------------------------------------------------------------------------
# Path 2: gridded, double-buffered copy with large lane-dense blocks.
# ---------------------------------------------------------------------------
def _copy_kernel(x_ref, o_ref):
    # Pure pass-through: mem-bound, so the only job is big unmasked tiles.
    o_ref[...] = x_ref[...]


def _round_up(v: int, m: int) -> int:
    return ((v + m - 1) // m) * m


def _pallas_identity_tiled(x: jax.Array) -> jax.Array:
    """Tiled identity copy (test/benchmark path only — NOT used by forward)."""
    orig_shape = x.shape
    total = x.size
    if total == 0:
        return x

    # Lane-dense 2D view.  Pad in the wrapper so *every* shape takes the tiled,
    # pipelined path (no untiled full-array fallback that can blow scoped VMEM).
    lanes = _WIDE_LANES if total >= 8 * _WIDE_LANES else _LANE
    rows = -(-total // lanes)
    padded_total = rows * lanes
    flat = x.reshape(total)
    if padded_total != total:
        flat = jnp.pad(flat, (0, padded_total - total))
    x2 = flat.reshape(rows, lanes)

    bytes_per_row = lanes * x.dtype.itemsize
    if rows <= 8:
        tile_rows = rows  # block_shape == full array dims -> always legal
    else:
        # ~4 MiB blocks, multiple of 8 sublanes; cap so grid >= 2 when
        # splittable (keeps both v7x TensorCores busy via "parallel" axis).
        tile_rows = max(8, (_TARGET_BLOCK_BYTES // bytes_per_row) // 8 * 8)
        half = _round_up(-(-rows // 2), 8)
        tile_rows = min(tile_rows, half, _round_up(rows, 8))
    grid = (pl.cdiv(rows, tile_rows),)  # ragged last block handled by Pallas

    y2 = pl.pallas_call(
        _copy_kernel,
        out_shape=jax.ShapeDtypeStruct((rows, lanes), x.dtype),
        grid_spec=pltpu.PrefetchScalarGridSpec(
            num_scalar_prefetch=0,
            grid=grid,
            in_specs=[pl.BlockSpec((tile_rows, lanes), lambda i: (i, 0))],
            out_specs=pl.BlockSpec((tile_rows, lanes), lambda i: (i, 0)),
        ),
        compiler_params=pltpu.CompilerParams(
            dimension_semantics=("parallel",),
            vmem_limit_bytes=_VMEM_LIMIT_BYTES,
        ),
    )(x2)

    y = y2.reshape(padded_total)
    if padded_total != total:
        y = y[:total]
    return y.reshape(orig_shape)


# ---------------------------------------------------------------------------
# Module port
# ---------------------------------------------------------------------------
class BertEstimator:
    """JAX/Pallas port of the (empty) PyTorch BertEstimator."""

    def __init__(self, class_num: int = 2):
        # Reference __init__ defines no parameters.
        self.class_num = class_num

    def forward(self, x, output=None):
        # Reference forward is `pass` -> returns None.  No device work, no
        # host syncs, no HBM traffic (the faithful fast path).
        return None

    __call__ = forward


if __name__ == "__main__":
    key = jax.random.PRNGKey(0)
    # Small BERT-ish activation shape: batch=2, seq=8, hidden=32.
    x = jax.random.normal(key, (2, 8, 32), dtype=jnp.float32)

    model = BertEstimator(class_num=2)

    # Exercise both Pallas kernel paths once in the test harness (kept out of
    # the forward hot path on purpose) and verify identity semantics here only.
    y_dma = _pallas_identity_dma(x)
    y_tiled = _pallas_identity_tiled(x)
    jax.block_until_ready((y_dma, y_tiled))

    assert y_dma.shape == x.shape and y_dma.dtype == x.dtype
    assert y_tiled.shape == x.shape and y_tiled.dtype == x.dtype
    assert bool(jnp.array_equal(y_dma, x))
    assert bool(jnp.array_equal(y_tiled, x))

    # Full forward matches the reference semantics (returns None).
    result = model(x, output=None)
    assert result is None

    print("KERNEL_OK")
</pallas_src>

<mosaic_0001>
module attributes {stable_mosaic.version = 11 : i64} {
  func.func @_dma_copy_kernel(%arg0: memref<2x8x32xf32, #tpu.memory_space<any>>, %arg1: memref<2x8x32xf32, #tpu.memory_space<any>>, %arg2: memref<!tpu.dma_semaphore, #tpu.memory_space<semaphore_mem>>) attributes {dimension_semantics = [], scalar_prefetch = 0 : i64, scratch_operands = 1 : i64, tpu.core_type = #tpu.core_type<tc>} {
    tpu.enqueue_dma source(%arg0 : memref<2x8x32xf32, #tpu.memory_space<any>>) target(%arg1 : memref<2x8x32xf32, #tpu.memory_space<any>>) target_semaphore(%arg2 : memref<!tpu.dma_semaphore, #tpu.memory_space<semaphore_mem>>)
    tpu.wait_dma2 semaphore(%arg2 : memref<!tpu.dma_semaphore, #tpu.memory_space<semaphore_mem>>) src(%arg0 : memref<2x8x32xf32, #tpu.memory_space<any>>) dst(%arg1 : memref<2x8x32xf32, #tpu.memory_space<any>>)
    return
  }
}

</mosaic_0001>

<llo_original>
// kernel: tpu_custom_call.1
$region0: #{tpu_custom_call.1}
  #allocation0 [shape = 'u32[]', space=smem, size = 0x4, offset = 0x4, fixed_abs, tag = 'smem constant byte address 0x4 - core index']
  #allocation1 [shape = 'u32[144,128]{1,0:T(1,128)}', space=vmem, size = 0x12000, scoped, tag = 'internal scratch']
  #allocation2 [shape = 's32[1]{0}', space=sflag, size = 0x4, scoped, tag = 'scratch operand']
  #allocation3 [shape = 's32[]', space=sflag, size = 0x4, offset = 0, fixed_abs, tag = 'sflag constant byte address 0x0 - dummy sync flag']
  #allocation4 [shape = 'u32[0]{0}', space=smem, size = 0, offset = 0, fixed_abs, tag = 'smem constant byte address 0x0 - null']
  %s0 = inlined_call_operand.hbm [shape: f32[2,8,32], index: 0, kind: input, shape index: {}]
  %s1 = inlined_call_operand.hbm [shape: f32[2,8,32], index: 1, kind: output, shape index: {}]
  %s2 = sld [smem:[#allocation0]]
  $region2: #{tpu_custom_call.1} parent=0
    _
  %s4 = ssub.s32 1, %s2
  %s5 = scalar_select 0, %s4, %s2
  %s7 = sshll.u32 1, 14
  %s8 = sxor.u32 4294967295, %s7
  %12 = dma.general %s0, 256, %s1, [#allocation2], 131072, [#allocation4], 0, 0
  %s13 = smul.u32 2, 8
  %s14 = smul.u32 %s13, 1
  %s15 = sshll.u32 %s14, 4
  %16 = dma.done [#allocation2], %s15
  %17 = vsyncmov [#allocation2]
  %s18 = vpop.sfrf %17
  %p19 = scmp.eq.s32.totalorder %s18, 0
  %p20 = pneg %p19
  %22 = shalt.err (%p20)

</llo_original>
